<compile_context>
chip_gen: v7x
topology: tpu7x:2x2x1
jax: 0.10.0
libtpu: 0.0.40
codegen_flags: <defaults>
</compile_context>

<pallas_src>
import functools
import math

import jax
import jax.numpy as jnp
import numpy as np
from jax.experimental import pallas as pl
from jax.experimental.pallas import tpu as pltpu


def _round_up(x, m):
    return ((x + m - 1) // m) * m


def _pga_kernel(prior_ref, ct_ref, txt_ref, lab_ref,
                wq_ref, bq_ref, wkv_ref, bkv_ref,
                r_ref, e_ref, wo_ref, bo_ref,
                attended_ref, attn_ref):
    """One batch tile of the whole forward pass (weights stay resident)."""
    T = prior_ref.shape[0]              # batch-tile rows (multiple of 8)
    D = attended_ref.shape[-1]          # embed dim
    cd = wq_ref.dtype                   # MXU operand dtype (f32 or bf16)

    # ---- fused projections (tau and 1/sqrt(hd) are baked into wq/bq) --------
    q = jnp.dot(prior_ref[...], wq_ref[...],
                preferred_element_type=jnp.float32) + bq_ref[...]            # [T, D]

    kv = jnp.concatenate([ct_ref[...], txt_ref[...], lab_ref[...]], axis=0)  # [3T, D]
    kvp = jnp.dot(kv, wkv_ref[...],
                  preferred_element_type=jnp.float32) + bkv_ref[...]         # [3T, 2D]
    k2 = kvp[:, :D]                                                          # [3T, D]
    v2 = kvp[:, D:]                                                          # [3T, D]

    # ---- all-head logits via block-diagonal reduce matmul --------------------
    qb = jnp.concatenate([q, q, q], axis=0)                                  # [3T, D]
    logits = jnp.dot((qb * k2).astype(cd), r_ref[...],
                     preferred_element_type=jnp.float32)                     # [3T, H]

    l0 = logits[0 * T:1 * T]
    l1 = logits[1 * T:2 * T]
    l2 = logits[2 * T:3 * T]
    mx = jnp.maximum(jnp.maximum(l0, l1), l2)
    e0 = jnp.exp(l0 - mx)
    e1 = jnp.exp(l1 - mx)
    e2 = jnp.exp(l2 - mx)
    inv = 1.0 / (e0 + e1 + e2)          # exact reciprocal (1e-5 contract)
    w0, w1, w2 = e0 * inv, e1 * inv, e2 * inv                                # [T, H]

    # single lane-dense store of the raw attention weights: [T, 3H], columns
    # laid out modality-major (m*H + h); reshaped to [B, H, 1, 3] outside.
    attn_ref[...] = jnp.concatenate([w0, w1, w2], axis=1).astype(attn_ref.dtype)

    # ---- expand weights to feature width, form context (no VMEM scratch) ----
    w_all = jnp.concatenate([w0, w1, w2], axis=0).astype(cd)                 # [3T, H]
    w_exp = jnp.dot(w_all, e_ref[...], preferred_element_type=jnp.float32)   # [3T, D]
    wv = w_exp * v2
    ctx = wv[0 * T:1 * T] + wv[1 * T:2 * T] + wv[2 * T:3 * T]                # [T, D]

    # ---- folded MHA out_proj + module out_proj --------------------------------
    attended_ref[...] = (jnp.dot(ctx.astype(cd), wo_ref[...],
                                 preferred_element_type=jnp.float32)
                         + bo_ref[...]).astype(attended_ref.dtype)


def prior_guided_attention(prior, z_ct, z_txt, z_lab, params, *, num_heads,
                           tau=None, compute_dtype=jnp.float32, tile_b=128):
    """Wrapper: folds weights offline, pads/tiles batch, calls the kernel."""
    B, P = prior.shape
    D = z_ct.shape[-1]
    H = num_heads
    hd = D // H
    scale = 1.0 / math.sqrt(hd)
    inv_tau = 1.0 if tau is None else 1.0 / float(tau)

    p = {k: jnp.asarray(v, jnp.float32) for k, v in params.items()}

    # ---- offline weight folding (X @ W layout, i.e. transposed torch weights)
    wq_f = (p["wq"].T @ p["wiq"].T) * (inv_tau * scale)                # [P, D]
    bq_f = ((p["bq"] @ p["wiq"].T) * inv_tau + p["biq"]) * scale       # [D]
    wk_f = p["wk"].T @ p["wik"].T                                      # [D, D]
    bk_f = p["bk"] @ p["wik"].T + p["bik"]
    wv_f = p["wv"].T @ p["wiv"].T
    bv_f = p["bv"] @ p["wiv"].T + p["biv"]
    wkv_f = jnp.concatenate([wk_f, wv_f], axis=1)                      # [D, 2D]
    bkv_f = jnp.concatenate([bk_f, bv_f], axis=0)                      # [2D]
    wo_f = p["wom"].T @ p["wo"].T                                      # [D, D]
    bo_f = p["bom"] @ p["wo"].T + p["bo"]                              # [D]

    # block-diagonal head-reduce matrix R[D, H] and its broadcast transpose E[H, D]
    head_id = jnp.arange(D, dtype=jnp.int32) // hd
    r_mat = (head_id[:, None] == jnp.arange(H, dtype=jnp.int32)[None, :]).astype(compute_dtype)
    e_mat = r_mat.T

    # ---- batch padding (fill the 8-row sublane axis) and tiling --------------
    Bp = _round_up(max(B, 8), 8)
    TILE_B = min(tile_b, Bp)
    Bp = _round_up(Bp, TILE_B)
    pad = Bp - B

    def pad_b(x):
        x = x.astype(compute_dtype)
        return jnp.pad(x, ((0, pad), (0, 0))) if pad else x

    ops = (
        pad_b(prior), pad_b(z_ct), pad_b(z_txt), pad_b(z_lab),
        wq_f.astype(compute_dtype), bq_f.reshape(1, D),
        wkv_f.astype(compute_dtype), bkv_f.reshape(1, 2 * D),
        r_mat, e_mat,
        wo_f.astype(compute_dtype), bo_f.reshape(1, D),
    )

    def tiled(last):                   # batch-tiled operand
        return pl.BlockSpec((TILE_B, last), lambda i: (i, 0))

    def resident(shape):               # weights: same block for every tile
        nd = len(shape)
        return pl.BlockSpec(shape, lambda i: (0,) * nd)

    in_specs = [
        tiled(P), tiled(D), tiled(D), tiled(D),
        resident(wq_f.shape), resident((1, D)),
        resident(wkv_f.shape), resident((1, 2 * D)),
        resident(r_mat.shape), resident(e_mat.shape),
        resident(wo_f.shape), resident((1, D)),
    ]
    out_specs = (tiled(D), tiled(3 * H))

    attended_p, attn_p = pl.pallas_call(
        _pga_kernel,
        grid=(Bp // TILE_B,),
        in_specs=in_specs,
        out_specs=out_specs,
        out_shape=(
            jax.ShapeDtypeStruct((Bp, D), jnp.float32),
            jax.ShapeDtypeStruct((Bp, 3 * H), jnp.float32),
        ),
        compiler_params=pltpu.CompilerParams(
            dimension_semantics=("parallel",)),
    )(*ops)

    attended = attended_p[:B]
    # columns are m*H + h  ->  [B, H, 1, 3]
    attn_map = attn_p[:B].reshape(B, 3, H).transpose(0, 2, 1)[:, :, None, :]
    return attended, attn_map


# ------------------------- pure-JAX reference ---------------------------------
def reference(prior, z_ct, z_txt, z_lab, params, *, num_heads, tau=None):
    q = prior @ params["wq"].T + params["bq"]                              # [B, D]
    kv = jnp.stack([z_ct, z_txt, z_lab], axis=1)                           # [B, 3, D]
    k = kv @ params["wk"].T + params["bk"]
    v = kv @ params["wv"].T + params["bv"]
    if tau is not None:
        q = q / tau
    q = q[:, None, :]                                                      # [B, 1, D]
    q2 = q @ params["wiq"].T + params["biq"]
    k2 = k @ params["wik"].T + params["bik"]
    v2 = v @ params["wiv"].T + params["biv"]
    B, _, D = q2.shape
    H, hd = num_heads, D // num_heads
    q2 = q2.reshape(B, 1, H, hd).transpose(0, 2, 1, 3)
    k2 = k2.reshape(B, 3, H, hd).transpose(0, 2, 1, 3)
    v2 = v2.reshape(B, 3, H, hd).transpose(0, 2, 1, 3)
    logits = jnp.einsum("bhqd,bhkd->bhqk", q2, k2) / jnp.sqrt(hd)
    w = jax.nn.softmax(logits, axis=-1)                                    # [B, H, 1, 3]
    ctx = jnp.einsum("bhqk,bhkd->bhqd", w, v2)
    ctx = ctx.transpose(0, 2, 1, 3).reshape(B, 1, D)
    mha_out = ctx @ params["wom"].T + params["bom"]
    attended = mha_out[:, 0, :] @ params["wo"].T + params["bo"]
    return attended, w


if __name__ == "__main__":
    B, prior_dim, embed_dim, num_heads = 2, 16, 32, 4
    tau = 2.0

    key = jax.random.PRNGKey(0)
    keys = jax.random.split(key, 24)

    def lin(kw, kb, out_dim, in_dim):
        bound = 1.0 / math.sqrt(in_dim)
        w = jax.random.uniform(kw, (out_dim, in_dim), jnp.float32, -bound, bound)
        b = jax.random.uniform(kb, (out_dim,), jnp.float32, -bound, bound)
        return w, b

    # module linears
    wq, bq = lin(keys[0], keys[1], embed_dim, prior_dim)
    wk, bk = lin(keys[2], keys[3], embed_dim, embed_dim)
    wv, bv_ = lin(keys[4], keys[5], embed_dim, embed_dim)
    # nn.MultiheadAttention in_proj (split into q/k/v chunks) + its out_proj
    wiq, biq = lin(keys[6], keys[7], embed_dim, embed_dim)
    wik, bik = lin(keys[8], keys[9], embed_dim, embed_dim)
    wiv, biv = lin(keys[10], keys[11], embed_dim, embed_dim)
    wom, bom = lin(keys[12], keys[13], embed_dim, embed_dim)
    # module out_proj
    wo, bo = lin(keys[14], keys[15], embed_dim, embed_dim)

    params = dict(wq=wq, bq=bq, wk=wk, bk=bk, wv=wv, bv=bv_,
                  wiq=wiq, biq=biq, wik=wik, bik=bik, wiv=wiv, biv=biv,
                  wom=wom, bom=bom, wo=wo, bo=bo)

    prior = jax.random.normal(keys[16], (B, prior_dim), jnp.float32)
    z_ct = jax.random.normal(keys[17], (B, embed_dim), jnp.float32)
    z_txt = jax.random.normal(keys[18], (B, embed_dim), jnp.float32)
    z_lab = jax.random.normal(keys[19], (B, embed_dim), jnp.float32)

    attended, attn_map = prior_guided_attention(
        prior, z_ct, z_txt, z_lab, params, num_heads=num_heads, tau=tau,
        compute_dtype=jnp.float32)    # set jnp.bfloat16 on v6e/v7x for speed
    jax.block_until_ready((attended, attn_map))

    ref_att, ref_w = reference(prior, z_ct, z_txt, z_lab, params,
                               num_heads=num_heads, tau=tau)

    assert attended.shape == (B, embed_dim)
    assert attn_map.shape == (B, num_heads, 1, 3)
    np.testing.assert_allclose(np.asarray(attended), np.asarray(ref_att),
                               rtol=1e-5, atol=1e-5)
    np.testing.assert_allclose(np.asarray(attn_map), np.asarray(ref_w),
                               rtol=1e-5, atol=1e-5)

    print("KERNEL_OK")
</pallas_src>

<mosaic_0001>
module attributes {stable_mosaic.version = 11 : i64} {
  func.func @_pga_kernel(%arg0: i32, %arg1: memref<8x16xf32, #tpu.memory_space<vmem>>, %arg2: memref<8x32xf32, #tpu.memory_space<vmem>>, %arg3: memref<8x32xf32, #tpu.memory_space<vmem>>, %arg4: memref<8x32xf32, #tpu.memory_space<vmem>>, %arg5: memref<16x32xf32, #tpu.memory_space<vmem>>, %arg6: memref<1x32xf32, #tpu.memory_space<vmem>>, %arg7: memref<32x64xf32, #tpu.memory_space<vmem>>, %arg8: memref<1x64xf32, #tpu.memory_space<vmem>>, %arg9: memref<32x4xf32, #tpu.memory_space<vmem>>, %arg10: memref<4x32xf32, #tpu.memory_space<vmem>>, %arg11: memref<32x32xf32, #tpu.memory_space<vmem>>, %arg12: memref<1x32xf32, #tpu.memory_space<vmem>>, %arg13: memref<8x32xf32, #tpu.memory_space<vmem>>, %arg14: memref<8x12xf32, #tpu.memory_space<vmem>>) attributes {dimension_semantics = [#tpu.dimension_semantics<parallel>], iteration_bounds = array<i64: 1>, scalar_prefetch = 0 : i64, scratch_operands = 0 : i64, tpu.core_type = #tpu.core_type<tc>, window_params = [{transform_indices = @transform_0, window_bounds = array<i64: 8, 16>}, {transform_indices = @transform_1, window_bounds = array<i64: 8, 32>}, {transform_indices = @transform_2, window_bounds = array<i64: 8, 32>}, {transform_indices = @transform_3, window_bounds = array<i64: 8, 32>}, {pipeline_mode = #tpu.pipeline_mode<synchronous>, transform_indices = @transform_4, window_bounds = array<i64: 16, 32>}, {pipeline_mode = #tpu.pipeline_mode<synchronous>, transform_indices = @transform_5, window_bounds = array<i64: 1, 32>}, {pipeline_mode = #tpu.pipeline_mode<synchronous>, transform_indices = @transform_6, window_bounds = array<i64: 32, 64>}, {pipeline_mode = #tpu.pipeline_mode<synchronous>, transform_indices = @transform_7, window_bounds = array<i64: 1, 64>}, {pipeline_mode = #tpu.pipeline_mode<synchronous>, transform_indices = @transform_8, window_bounds = array<i64: 32, 4>}, {pipeline_mode = #tpu.pipeline_mode<synchronous>, transform_indices = @transform_9, window_bounds = array<i64: 4, 32>}, {pipeline_mode = #tpu.pipeline_mode<synchronous>, transform_indices = @transform_10, window_bounds = array<i64: 32, 32>}, {pipeline_mode = #tpu.pipeline_mode<synchronous>, transform_indices = @transform_11, window_bounds = array<i64: 1, 32>}, {transform_indices = @transform_12, window_bounds = array<i64: 8, 32>}, {transform_indices = @transform_13, window_bounds = array<i64: 8, 12>}]} {
    %c0 = arith.constant 0 : index
    %c0_0 = arith.constant 0 : index
    %0 = vector.load %arg1[%c0, %c0_0] : memref<8x16xf32, #tpu.memory_space<vmem>>, vector<8x16xf32>
    %c0_1 = arith.constant 0 : index
    %c0_2 = arith.constant 0 : index
    %1 = vector.load %arg5[%c0_1, %c0_2] : memref<16x32xf32, #tpu.memory_space<vmem>>, vector<16x32xf32>
    %cst = arith.constant dense<0.000000e+00> : vector<8x32xf32>
    %2 = tpu.matmul %0, %1, %cst {dimension_numbers = #tpu.dot_dimension_numbers<[1], [0], [0], [1], [0, 0, 1, 1], [], []>} : vector<8x16xf32>, vector<16x32xf32>, vector<8x32xf32> -> vector<8x32xf32>
    %c0_3 = arith.constant 0 : index
    %c0_4 = arith.constant 0 : index
    %3 = vector.load %arg6[%c0_3, %c0_4] : memref<1x32xf32, #tpu.memory_space<vmem>>, vector<1x32xf32>
    %4 = vector.broadcast %3 : vector<1x32xf32> to vector<8x32xf32>
    %5 = arith.addf %2, %4 : vector<8x32xf32>
    %c0_5 = arith.constant 0 : index
    %c0_6 = arith.constant 0 : index
    %6 = vector.load %arg2[%c0_5, %c0_6] : memref<8x32xf32, #tpu.memory_space<vmem>>, vector<8x32xf32>
    %c0_7 = arith.constant 0 : index
    %c0_8 = arith.constant 0 : index
    %7 = vector.load %arg3[%c0_7, %c0_8] : memref<8x32xf32, #tpu.memory_space<vmem>>, vector<8x32xf32>
    %c0_9 = arith.constant 0 : index
    %c0_10 = arith.constant 0 : index
    %8 = vector.load %arg4[%c0_9, %c0_10] : memref<8x32xf32, #tpu.memory_space<vmem>>, vector<8x32xf32>
    %9 = tpu.concatenate %6, %7, %8 in 0 : vector<8x32xf32>, vector<8x32xf32>, vector<8x32xf32> -> vector<24x32xf32>
    %c0_11 = arith.constant 0 : index
    %c0_12 = arith.constant 0 : index
    %10 = vector.load %arg7[%c0_11, %c0_12] : memref<32x64xf32, #tpu.memory_space<vmem>>, vector<32x64xf32>
    %cst_13 = arith.constant dense<0.000000e+00> : vector<24x64xf32>
    %11 = tpu.matmul %9, %10, %cst_13 {dimension_numbers = #tpu.dot_dimension_numbers<[1], [0], [0], [1], [0, 0, 1, 1], [], []>} : vector<24x32xf32>, vector<32x64xf32>, vector<24x64xf32> -> vector<24x64xf32>
    %c0_14 = arith.constant 0 : index
    %c0_15 = arith.constant 0 : index
    %12 = vector.load %arg8[%c0_14, %c0_15] : memref<1x64xf32, #tpu.memory_space<vmem>>, vector<1x64xf32>
    %13 = vector.broadcast %12 : vector<1x64xf32> to vector<24x64xf32>
    %14 = arith.addf %11, %13 : vector<24x64xf32>
    %15 = vector.extract_strided_slice %14 {offsets = [0, 0], sizes = [24, 32], strides = [1, 1]} : vector<24x64xf32> to vector<24x32xf32>
    %16 = vector.extract_strided_slice %14 {offsets = [0, 32], sizes = [24, 32], strides = [1, 1]} : vector<24x64xf32> to vector<24x32xf32>
    %17 = tpu.concatenate %5, %5, %5 in 0 : vector<8x32xf32>, vector<8x32xf32>, vector<8x32xf32> -> vector<24x32xf32>
    %18 = arith.mulf %17, %15 : vector<24x32xf32>
    %c0_16 = arith.constant 0 : index
    %c0_17 = arith.constant 0 : index
    %19 = vector.load %arg9[%c0_16, %c0_17] : memref<32x4xf32, #tpu.memory_space<vmem>>, vector<32x4xf32>
    %cst_18 = arith.constant dense<0.000000e+00> : vector<24x4xf32>
    %20 = tpu.matmul %18, %19, %cst_18 {dimension_numbers = #tpu.dot_dimension_numbers<[1], [0], [0], [1], [0, 0, 1, 1], [], []>} : vector<24x32xf32>, vector<32x4xf32>, vector<24x4xf32> -> vector<24x4xf32>
    %21 = vector.extract_strided_slice %20 {offsets = [0, 0], sizes = [8, 4], strides = [1, 1]} : vector<24x4xf32> to vector<8x4xf32>
    %22 = vector.extract_strided_slice %20 {offsets = [8, 0], sizes = [8, 4], strides = [1, 1]} : vector<24x4xf32> to vector<8x4xf32>
    %23 = vector.extract_strided_slice %20 {offsets = [16, 0], sizes = [8, 4], strides = [1, 1]} : vector<24x4xf32> to vector<8x4xf32>
    %24 = arith.maximumf %21, %22 : vector<8x4xf32>
    %25 = arith.maximumf %24, %23 : vector<8x4xf32>
    %26 = arith.subf %21, %25 : vector<8x4xf32>
    %27 = math.exp %26 : vector<8x4xf32>
    %28 = arith.subf %22, %25 : vector<8x4xf32>
    %29 = math.exp %28 : vector<8x4xf32>
    %30 = arith.subf %23, %25 : vector<8x4xf32>
    %31 = math.exp %30 : vector<8x4xf32>
    %32 = arith.addf %27, %29 : vector<8x4xf32>
    %33 = arith.addf %32, %31 : vector<8x4xf32>
    %cst_19 = arith.constant 1.000000e+00 : f32
    %34 = vector.broadcast %cst_19 : f32 to vector<8x4xf32>
    %35 = arith.divf %34, %33 : vector<8x4xf32>
    %36 = arith.mulf %27, %35 : vector<8x4xf32>
    %37 = arith.mulf %29, %35 : vector<8x4xf32>
    %38 = arith.mulf %31, %35 : vector<8x4xf32>
    %39 = tpu.concatenate %36, %37, %38 in 1 : vector<8x4xf32>, vector<8x4xf32>, vector<8x4xf32> -> vector<8x12xf32>
    %c0_20 = arith.constant 0 : index
    %c0_21 = arith.constant 0 : index
    %40 = vector.load %arg14[%c0_20, %c0_21] : memref<8x12xf32, #tpu.memory_space<vmem>>, vector<8x12xf32>
    tpu.vector_store %arg14[%c0_20, %c0_21], %39 {strides = array<i32>} : memref<8x12xf32, #tpu.memory_space<vmem>>, vector<8x12xf32>,
    %41 = tpu.concatenate %36, %37, %38 in 0 : vector<8x4xf32>, vector<8x4xf32>, vector<8x4xf32> -> vector<24x4xf32>
    %c0_22 = arith.constant 0 : index
    %c0_23 = arith.constant 0 : index
    %42 = vector.load %arg10[%c0_22, %c0_23] : memref<4x32xf32, #tpu.memory_space<vmem>>, vector<4x32xf32>
    %cst_24 = arith.constant dense<0.000000e+00> : vector<24x32xf32>
    %43 = tpu.matmul %41, %42, %cst_24 {dimension_numbers = #tpu.dot_dimension_numbers<[1], [0], [0], [1], [0, 0, 1, 1], [], []>} : vector<24x4xf32>, vector<4x32xf32>, vector<24x32xf32> -> vector<24x32xf32>
    %44 = arith.mulf %43, %16 : vector<24x32xf32>
    %45 = vector.extract_strided_slice %44 {offsets = [0, 0], sizes = [8, 32], strides = [1, 1]} : vector<24x32xf32> to vector<8x32xf32>
    %46 = vector.extract_strided_slice %44 {offsets = [8, 0], sizes = [8, 32], strides = [1, 1]} : vector<24x32xf32> to vector<8x32xf32>
    %47 = arith.addf %45, %46 : vector<8x32xf32>
    %48 = vector.extract_strided_slice %44 {offsets = [16, 0], sizes = [8, 32], strides = [1, 1]} : vector<24x32xf32> to vector<8x32xf32>
    %49 = arith.addf %47, %48 : vector<8x32xf32>
    %c0_25 = arith.constant 0 : index
    %c0_26 = arith.constant 0 : index
    %50 = vector.load %arg11[%c0_25, %c0_26] : memref<32x32xf32, #tpu.memory_space<vmem>>, vector<32x32xf32>
    %cst_27 = arith.constant dense<0.000000e+00> : vector<8x32xf32>
    %51 = tpu.matmul %49, %50, %cst_27 {dimension_numbers = #tpu.dot_dimension_numbers<[1], [0], [0], [1], [0, 0, 1, 1], [], []>} : vector<8x32xf32>, vector<32x32xf32>, vector<8x32xf32> -> vector<8x32xf32>
    %c0_28 = arith.constant 0 : index
    %c0_29 = arith.constant 0 : index
    %52 = vector.load %arg12[%c0_28, %c0_29] : memref<1x32xf32, #tpu.memory_space<vmem>>, vector<1x32xf32>
    %53 = vector.broadcast %52 : vector<1x32xf32> to vector<8x32xf32>
    %54 = arith.addf %51, %53 : vector<8x32xf32>
    %c0_30 = arith.constant 0 : index
    %c0_31 = arith.constant 0 : index
    %55 = vector.load %arg13[%c0_30, %c0_31] : memref<8x32xf32, #tpu.memory_space<vmem>>, vector<8x32xf32>
    tpu.vector_store %arg13[%c0_30, %c0_31], %54 {strides = array<i32>} : memref<8x32xf32, #tpu.memory_space<vmem>>, vector<8x32xf32>,
    return
  }
  func.func @transform_0(%arg0: i32) -> (i32, i32) {
    %c0_i32 = arith.constant 0 : i32
    %c0_i32_0 = arith.constant 0 : i32
    return %arg0, %c0_i32 : i32, i32
  }
  func.func @transform_1(%arg0: i32) -> (i32, i32) {
    %c0_i32 = arith.constant 0 : i32
    %c0_i32_0 = arith.constant 0 : i32
    return %arg0, %c0_i32 : i32, i32
  }
  func.func @transform_2(%arg0: i32) -> (i32, i32) {
    %c0_i32 = arith.constant 0 : i32
    %c0_i32_0 = arith.constant 0 : i32
    return %arg0, %c0_i32 : i32, i32
  }
  func.func @transform_3(%arg0: i32) -> (i32, i32) {
    %c0_i32 = arith.constant 0 : i32
    %c0_i32_0 = arith.constant 0 : i32
    return %arg0, %c0_i32 : i32, i32
  }
  func.func @transform_4(%arg0: i32) -> (i32, i32) {
    %c0_i32 = arith.constant 0 : i32
    %c0_i32_0 = arith.constant 0 : i32
    %c0_i32_1 = arith.constant 0 : i32
    return %c0_i32, %c0_i32_0 : i32, i32
  }
  func.func @transform_5(%arg0: i32) -> (i32, i32) {
    %c0_i32 = arith.constant 0 : i32
    %c0_i32_0 = arith.constant 0 : i32
    %c0_i32_1 = arith.constant 0 : i32
    return %c0_i32, %c0_i32_0 : i32, i32
  }
  func.func @transform_6(%arg0: i32) -> (i32, i32) {
    %c0_i32 = arith.constant 0 : i32
    %c0_i32_0 = arith.constant 0 : i32
    %c0_i32_1 = arith.constant 0 : i32
    return %c0_i32, %c0_i32_0 : i32, i32
  }
  func.func @transform_7(%arg0: i32) -> (i32, i32) {
    %c0_i32 = arith.constant 0 : i32
    %c0_i32_0 = arith.constant 0 : i32
    %c0_i32_1 = arith.constant 0 : i32
    return %c0_i32, %c0_i32_0 : i32, i32
  }
  func.func @transform_8(%arg0: i32) -> (i32, i32) {
    %c0_i32 = arith.constant 0 : i32
    %c0_i32_0 = arith.constant 0 : i32
    %c0_i32_1 = arith.constant 0 : i32
    return %c0_i32, %c0_i32_0 : i32, i32
  }
  func.func @transform_9(%arg0: i32) -> (i32, i32) {
    %c0_i32 = arith.constant 0 : i32
    %c0_i32_0 = arith.constant 0 : i32
    %c0_i32_1 = arith.constant 0 : i32
    return %c0_i32, %c0_i32_0 : i32, i32
  }
  func.func @transform_10(%arg0: i32) -> (i32, i32) {
    %c0_i32 = arith.constant 0 : i32
    %c0_i32_0 = arith.constant 0 : i32
    %c0_i32_1 = arith.constant 0 : i32
    return %c0_i32, %c0_i32_0 : i32, i32
  }
  func.func @transform_11(%arg0: i32) -> (i32, i32) {
    %c0_i32 = arith.constant 0 : i32
    %c0_i32_0 = arith.constant 0 : i32
    %c0_i32_1 = arith.constant 0 : i32
    return %c0_i32, %c0_i32_0 : i32, i32
  }
  func.func @transform_12(%arg0: i32) -> (i32, i32) {
    %c0_i32 = arith.constant 0 : i32
    %c0_i32_0 = arith.constant 0 : i32
    return %arg0, %c0_i32 : i32, i32
  }
  func.func @transform_13(%arg0: i32) -> (i32, i32) {
    %c0_i32 = arith.constant 0 : i32
    %c0_i32_0 = arith.constant 0 : i32
    return %arg0, %c0_i32 : i32, i32
  }
}

</mosaic_0001>

<llo_original>
// kernel: tpu_custom_call.1
$region0: #{tpu_custom_call.1}
  #allocation0 [shape = 'u32[]', space=smem, size = 0x4, offset = 0x4, fixed_abs, tag = 'smem constant byte address 0x4 - core index']
  #allocation1 [shape = 'u32[144,128]{1,0:T(1,128)}', space=vmem, size = 0x12000, scoped, tag = 'internal scratch']
  %s0 = inlined_call_operand.hbm [shape: f32[8,16], index: 0, kind: input, shape index: {}]
  %s1 = inlined_call_operand.hbm [shape: f32[8,32], index: 1, kind: input, shape index: {}]
  %s2 = inlined_call_operand.hbm [shape: f32[8,32], index: 2, kind: input, shape index: {}]
  %s3 = inlined_call_operand.hbm [shape: f32[8,32], index: 3, kind: input, shape index: {}]
  %s4 = inlined_call_operand.hbm [shape: f32[16,32], index: 4, kind: input, shape index: {}]
  %s5 = inlined_call_operand.vmem [shape: f32[1,32], index: 5, kind: input, shape index: {}]
  %s6 = inlined_call_operand.vmem [shape: f32[32,64], index: 6, kind: input, shape index: {}]
  %s7 = inlined_call_operand.vmem [shape: f32[1,64], index: 7, kind: input, shape index: {}]
  %s8 = inlined_call_operand.vmem [shape: f32[32,4], index: 8, kind: input, shape index: {}]
  %s9 = inlined_call_operand.vmem [shape: f32[4,32], index: 9, kind: input, shape index: {}]
  %s10 = inlined_call_operand.vmem [shape: f32[32,32], index: 10, kind: input, shape index: {}]
  %s11 = inlined_call_operand.vmem [shape: f32[1,32], index: 11, kind: input, shape index: {}]
  %s12 = inlined_call_operand.hbm [shape: f32[8,32], index: 12, kind: output, shape index: {0}]
  %s13 = inlined_call_operand.hbm [shape: f32[8,12], index: 13, kind: output, shape index: {1}]
  %14 = xla_tuple %s12, %s13
  %s15 = sld [smem:[#allocation0]]
  $region86: #{tpu_custom_call.1} parent=0
    _
  %s17 = ssub.s32 1, %s15
  %s18 = scalar_select 0, %s17, %s15
  $region1: #{tpu_custom_call.1} parent=0
    #allocation2 [shape = 'u8[4096]{0}', space=vmem, size = 0x1000, scoped, tag = 'input window, operand 0, single buffered']
    #allocation3 [shape = 's32[1]{0}', space=sflag, size = 0x4, scoped, tag = 'scoped memory for tpu_custom_call.1']
    #allocation4 [shape = 's32[1]{0}', space=sflag, size = 0x4, scoped, tag = 'scoped memory for tpu_custom_call.1']
    #allocation5 [shape = 'u8[4096]{0}', space=vmem, size = 0x1000, scoped, tag = 'input window, operand 1, single buffered']
    #allocation6 [shape = 's32[1]{0}', space=sflag, size = 0x4, scoped, tag = 'scoped memory for tpu_custom_call.1']
    #allocation7 [shape = 'u8[4096]{0}', space=vmem, size = 0x1000, scoped, tag = 'input window, operand 2, single buffered']
    #allocation8 [shape = 'u8[4096]{0}', space=vmem, size = 0x1000, scoped, tag = 'input window, operand 3, single buffered']
    #allocation9 [shape = 's32[1]{0}', space=sflag, size = 0x4, scoped, tag = 'scoped memory for tpu_custom_call.1']
    #allocation10 [shape = 'u8[8192]{0}', space=vmem, size = 0x2000, scoped, tag = 'input window, operand 4, single buffered']
    #allocation11 [shape = 'u8[4096]{0}', space=vmem, size = 0x1000, scoped, tag = 'output window, operand 0, single buffered']
    #allocation12 [shape = 'u8[4096]{0}', space=vmem, size = 0x1000, scoped, tag = 'output window, operand 1, single buffered']
    #allocation13 [shape = 's32[1]{0}', space=sflag, size = 0x4, scoped, tag = 'scoped memory for tpu_custom_call.1']
    %19 = vsyncpa [#allocation3], 0
    %20 = vsyncpa [#allocation6], 0
    %21 = vsyncpa [#allocation9], 0
    %22 = vsyncpa [#allocation4], 0
    %23 = vsyncpa [#allocation13], 0
    // Predicated region
    $region2: #{tpu_custom_call.1} parent=1 // pred_check
      _
    $region3: #{tpu_custom_call.1} parent=1 // pred_check_branch
      %25 = sbr.rel (0) target = $region5
    $region4: #{tpu_custom_call.1} parent=1 // pred_region
      %s27 = ssub.s32 128, 128
      %28 = vsyncadd [#allocation3], %s27
      %s30 = sshll.u32 [#allocation2], 4
      %s31 = int_to_ptr.vmem [resolvable:$true] %s30
      %33 = dma.hbm_to_vmem [thread:$0]  %s0, 128, %s31, [#allocation3]
    $region5: #{tpu_custom_call.1} parent=1 // pred_fallthru
      _
    // Predicated region
    $region6: #{tpu_custom_call.1} parent=1 // pred_check
      _
    $region7: #{tpu_custom_call.1} parent=1 // pred_check_branch
      %35 = sbr.rel (0) target = $region9
    $region8: #{tpu_custom_call.1} parent=1 // pred_region
      %s37 = ssub.s32 128, 128
      %38 = vsyncadd [#allocation6], %s37
      %s40 = sshll.u32 [#allocation5], 4
      %s41 = int_to_ptr.vmem [resolvable:$true] %s40
      %43 = dma.hbm_to_vmem [thread:$0]  %s1, 128, %s41, [#allocation6]
    $region9: #{tpu_custom_call.1} parent=1 // pred_fallthru
      _
    // Predicated region
    $region10: #{tpu_custom_call.1} parent=1 // pred_check
      _
    $region11: #{tpu_custom_call.1} parent=1 // pred_check_branch
      %45 = sbr.rel (0) target = $region13
    $region12: #{tpu_custom_call.1} parent=1 // pred_region
      %s47 = ssub.s32 128, 128
      %48 = vsyncadd [#allocation6], %s47
      %s50 = sshll.u32 [#allocation7], 4
      %s51 = int_to_ptr.vmem [resolvable:$true] %s50
      %53 = dma.hbm_to_vmem [thread:$0]  %s2, 128, %s51, [#allocation6]
    $region13: #{tpu_custom_call.1} parent=1 // pred_fallthru
      _
    // Predicated region
    $region14: #{tpu_custom_call.1} parent=1 // pred_check
      _
    $region15: #{tpu_custom_call.1} parent=1 // pred_check_branch
      %55 = sbr.rel (0) target = $region17
    $region16: #{tpu_custom_call.1} parent=1 // pred_region
      %s57 = ssub.s32 128, 128
      %58 = vsyncadd [#allocation9], %s57
      %s60 = sshll.u32 [#allocation8], 4
      %s61 = int_to_ptr.vmem [resolvable:$true] %s60
      %63 = dma.hbm_to_vmem [thread:$0]  %s3, 128, %s61, [#allocation9]
    $region17: #{tpu_custom_call.1} parent=1 // pred_fallthru
      _
    // Predicated region
    $region18: #{tpu_custom_call.1} parent=1 // pred_check
      _
    $region19: #{tpu_custom_call.1} parent=1 // pred_check_branch
      %65 = sbr.rel (0) target = $region21
    $region20: #{tpu_custom_call.1} parent=1 // pred_region
      %s67 = ssub.s32 256, 256
      %68 = vsyncadd [#allocation9], %s67
      %s69 = sshll.u32 [#allocation10], 4
      %s70 = int_to_ptr.vmem [resolvable:$true] %s69
      %75 = dma.hbm_to_vmem [thread:$0]  %s4, 256, %s70, [#allocation9], 128, 128, 8
    $region21: #{tpu_custom_call.1} parent=1 // pred_fallthru
      _
    // Predicated region
    $region22: #{tpu_custom_call.1} parent=1 // pred_check
      _
    $region23: #{tpu_custom_call.1} parent=1 // pred_check_branch
      %77 = sbr.rel (0) target = $region25
    $region24: #{tpu_custom_call.1} parent=1 // pred_region
      _
    $region25: #{tpu_custom_call.1} parent=1 // pred_fallthru
      _
    // Predicated region
    $region26: #{tpu_custom_call.1} parent=1 // pred_check
      _
    $region27: #{tpu_custom_call.1} parent=1 // pred_check_branch
      %79 = sbr.rel (0) target = $region29
    $region28: #{tpu_custom_call.1} parent=1 // pred_region
      _
    $region29: #{tpu_custom_call.1} parent=1 // pred_fallthru
      _
    // Predicated region
    $region30: #{tpu_custom_call.1} parent=1 // pred_check
      _
    $region31: #{tpu_custom_call.1} parent=1 // pred_check_branch
      %81 = sbr.rel (0) target = $region33
    $region32: #{tpu_custom_call.1} parent=1 // pred_region
      _
    $region33: #{tpu_custom_call.1} parent=1 // pred_fallthru
      _
    // Predicated region
    $region34: #{tpu_custom_call.1} parent=1 // pred_check
      _
    $region35: #{tpu_custom_call.1} parent=1 // pred_check_branch
      %83 = sbr.rel (0) target = $region37
    $region36: #{tpu_custom_call.1} parent=1 // pred_region
      _
    $region37: #{tpu_custom_call.1} parent=1 // pred_fallthru
      _
    // Predicated region
    $region38: #{tpu_custom_call.1} parent=1 // pred_check
      _
    $region39: #{tpu_custom_call.1} parent=1 // pred_check_branch
      %85 = sbr.rel (0) target = $region41
    $region40: #{tpu_custom_call.1} parent=1 // pred_region
      _
    $region41: #{tpu_custom_call.1} parent=1 // pred_fallthru
      _
    // Predicated region
    $region42: #{tpu_custom_call.1} parent=1 // pred_check
      _
    $region43: #{tpu_custom_call.1} parent=1 // pred_check_branch
      %87 = sbr.rel (0) target = $region45
    $region44: #{tpu_custom_call.1} parent=1 // pred_region
      _
    $region45: #{tpu_custom_call.1} parent=1 // pred_fallthru
      _
    // Predicated region
    $region46: #{tpu_custom_call.1} parent=1 // pred_check
      _
    $region47: #{tpu_custom_call.1} parent=1 // pred_check_branch
      %89 = sbr.rel (0) target = $region49
    $region48: #{tpu_custom_call.1} parent=1 // pred_region
      _
    $region49: #{tpu_custom_call.1} parent=1 // pred_fallthru
      _
    // Predicated region
    $region50: #{tpu_custom_call.1} parent=1 // pred_check
      _
    $region51: #{tpu_custom_call.1} parent=1 // pred_check_branch
      %91 = sbr.rel (0) target = $region53
    $region52: #{tpu_custom_call.1} parent=1 // pred_region
      %92 = dma.done [#allocation3], 128
    $region53: #{tpu_custom_call.1} parent=1 // pred_fallthru
      _
    // Predicated region
    $region54: #{tpu_custom_call.1} parent=1 // pred_check
      _
    $region55: #{tpu_custom_call.1} parent=1 // pred_check_branch
      %94 = sbr.rel (0) target = $region57
    $region56: #{tpu_custom_call.1} parent=1 // pred_region
      %95 = dma.done [#allocation6], 128
    $region57: #{tpu_custom_call.1} parent=1 // pred_fallthru
      _
    // Predicated region
    $region58: #{tpu_custom_call.1} parent=1 // pred_check
      _
    $region59: #{tpu_custom_call.1} parent=1 // pred_check_branch
      %97 = sbr.rel (0) target = $region61
    $region60: #{tpu_custom_call.1} parent=1 // pred_region
      %98 = dma.done [#allocation6], 128
    $region61: #{tpu_custom_call.1} parent=1 // pred_fallthru
      _
    // Predicated region
    $region62: #{tpu_custom_call.1} parent=1 // pred_check
      _
    $region63: #{tpu_custom_call.1} parent=1 // pred_check_branch
      %100 = sbr.rel (0) target = $region65
    $region64: #{tpu_custom_call.1} parent=1 // pred_region
      %101 = dma.done [#allocation9], 128
    $region65: #{tpu_custom_call.1} parent=1 // pred_fallthru
      _
    // Predicated region
    $region66: #{tpu_custom_call.1} parent=1 // pred_check
      _
    $region67: #{tpu_custom_call.1} parent=1 // pred_check_branch
      %103 = sbr.rel (0) target = $region69
    $region68: #{tpu_custom_call.1} parent=1 // pred_region
      %104 = dma.done [#allocation9], 256
    $region69: #{tpu_custom_call.1} parent=1 // pred_fallthru
      _
    %v105 = vld [vmem:[#allocation2] sm:$0xff]
    %v106 = vld [vmem:[#allocation10] sm:$0xff]
    %v107 = vld [vmem:[#allocation10 + $0x8] sm:$0xff]
    %v108 = vld [vmem:[%s5] sm:$0x1]
    %v110 = vlaneseq
    %v111 = vshrl.u32 %v110, 7
    %v112 = vsub.s32 0, %v111
    %v113 = vrot.slane %v108, %v112
    %vm115 = vcmask 130048
    %v117 = vsel %vm115, %v105, 0
    %119 = vmatprep.subr.mxu0 0.0
    %120 = vmatpush1.msra.mxu0 %v106
    %121 = vmatprep.subr.mxu0 0.0
    %122 = vmatpush1.msra.mxu0 %v107
    %123 = vmatprep.subr.mxu0 0.0
    %124 = vmatpush1.msra.mxu0 0.0
    %125 = vmatprep.subr.mxu0 0.0
    %126 = vmatpush1.msra.mxu0 0.0
    %127 = vmatprep.subr.mxu0 0.0
    %128 = vmatpush1.msra.mxu0 0.0
    %129 = vmatprep.subr.mxu0 0.0
    %130 = vmatpush1.msra.mxu0 0.0
    %131 = vmatprep.subr.mxu0 0.0
    %132 = vmatpush1.msra.mxu0 0.0
    %133 = vmatprep.subr.mxu0 0.0
    %134 = vmatpush1.msra.mxu0 0.0
    %135 = vmatprep.subr.mxu0 0.0
    %136 = vmatpush1.msra.mxu0 0.0
    %137 = vmatprep.subr.mxu0 0.0
    %138 = vmatpush1.msra.mxu0 0.0
    %139 = vmatprep.subr.mxu0 0.0
    %140 = vmatpush1.msra.mxu0 0.0
    %141 = vmatprep.subr.mxu0 0.0
    %142 = vmatpush1.msra.mxu0 0.0
    %143 = vmatprep.subr.mxu0 0.0
    %144 = vmatpush1.msra.mxu0 0.0
    %145 = vmatprep.subr.mxu0 0.0
    %146 = vmatpush1.msra.mxu0 0.0
    %147 = vmatprep.subr.mxu0 0.0
    %148 = vmatpush1.msra.mxu0 0.0
    %149 = vmatprep.subr.mxu0 0.0
    %150 = vmatpush1.msra.mxu0 0.0
    %151 = vmatprep.subr.mxu0 0.0
    %152 = vmatpush1.msra.mxu0 0.0
    %153 = vmatprep.subr.mxu0 0.0
    %154 = vmatpush1.msra.mxu0 0.0
    %155 = vmatprep.subr.mxu0 0.0
    %156 = vmatpush1.msra.mxu0 0.0
    %157 = vmatprep.subr.mxu0 0.0
    %158 = vmatpush1.msra.mxu0 0.0
    %159 = vmatprep.subr.mxu0 0.0
    %160 = vmatpush1.msra.mxu0 0.0
    %161 = vmatprep.subr.mxu0 0.0
    %162 = vmatpush1.msra.mxu0 0.0
    %163 = vmatprep.subr.mxu0 0.0
    %164 = vmatpush1.msra.mxu0 0.0
    %165 = vmatprep.subr.mxu0 0.0
    %166 = vmatpush1.msra.mxu0 0.0
    %167 = vmatprep.subr.mxu0 0.0
    %168 = vmatpush1.msra.mxu0 0.0
    %169 = vmatprep.subr.mxu0 0.0
    %170 = vmatpush1.msra.mxu0 0.0
    %171 = vmatprep.subr.mxu0 0.0
    %172 = vmatpush1.msra.mxu0 0.0
    %173 = vmatprep.subr.mxu0 0.0
    %174 = vmatpush1.msra.mxu0 0.0
    %175 = vmatprep.subr.mxu0 0.0
    %176 = vmatpush1.msra.mxu0 0.0
    %177 = vmatprep.subr.mxu0 0.0
    %178 = vmatpush1.msra.mxu0 0.0
    %179 = vmatprep.subr.mxu0 0.0
    %180 = vmatpush1.msra.mxu0 0.0
    %181 = vmatprep.subr.mxu0 0.0
    %182 = vmatpush1.msra.mxu0 0.0
    %183 = vmatprep.mubr.f32.mxu0 0.0
    %184 = vmatmul.mubr.f32.gmra.mrb[0].mxu0 %v117
    %v185 = vpop.f32.mrb[0].mxu0
    %v186 = vadd.f32 %v113, %v185
    %v187 = vpop.f32.mrb[0].mxu0
    %188 = vdwg.mxu0
    %v189 = vld [vmem:[#allocation5] sm:$0xff]
    %v190 = vld [vmem:[#allocation7] sm:$0xff]
    %v191 = vld [vmem:[#allocation8] sm:$0xff]
    %v192 = vld [vmem:[%s6] sm:$0xff]
    %v193 = vld [vmem:[%s6 + $0x8] sm:$0xff]
    %v194 = vld [vmem:[%s6 + $0x10] sm:$0xff]
    %v195 = vld [vmem:[%s6 + $0x18] sm:$0xff]
    %v196 = vld [vmem:[%s7] sm:$0x1]
    %v198 = vlaneseq
    %v199 = vshrl.u32 %v198, 7
    %v200 = vsub.s32 0, %v199
    %v201 = vrot.slane %v196, %v200
    %vm203 = vcmask 261120
    %v205 = vsel %vm203, %v189, 0
    %v208 = vsel %vm203, %v190, 0
    %v211 = vsel %vm203, %v191, 0
    %213 = vmatprep.subr.mxu0 0.0
    %214 = vmatpush1.msra.mxu0 %v192
    %215 = vmatprep.subr.mxu0 0.0
    %216 = vmatpush1.msra.mxu0 %v193
    %217 = vmatprep.subr.mxu0 0.0
    %218 = vmatpush1.msra.mxu0 %v194
    %219 = vmatprep.subr.mxu0 0.0
    %220 = vmatpush1.msra.mxu0 %v195
    %221 = vmatprep.subr.mxu0 0.0
    %222 = vmatpush1.msra.mxu0 0.0
    %223 = vmatprep.subr.mxu0 0.0
    %224 = vmatpush1.msra.mxu0 0.0
    %225 = vmatprep.subr.mxu0 0.0
    %226 = vmatpush1.msra.mxu0 0.0
    %227 = vmatprep.subr.mxu0 0.0
    %228 = vmatpush1.msra.mxu0 0.0
    %229 = vmatprep.subr.mxu0 0.0
    %230 = vmatpush1.msra.mxu0 0.0
    %231 = vmatprep.subr.mxu0 0.0
    %232 = vmatpush1.msra.mxu0 0.0
    %233 = vmatprep.subr.mxu0 0.0
    %234 = vmatpush1.msra.mxu0 0.0
    %235 = vmatprep.subr.mxu0 0.0
    %236 = vmatpush1.msra.mxu0 0.0
    %237 = vmatprep.subr.mxu0 0.0
    %238 = vmatpush1.msra.mxu0 0.0
    %239 = vmatprep.subr.mxu0 0.0
    %240 = vmatpush1.msra.mxu0 0.0
    %241 = vmatprep.subr.mxu0 0.0
    %242 = vmatpush1.msra.mxu0 0.0
    %243 = vmatprep.subr.mxu0 0.0
    %244 = vmatpush1.msra.mxu0 0.0
    %245 = vmatprep.subr.mxu0 0.0
    %246 = vmatpush1.msra.mxu0 0.0
    %247 = vmatprep.subr.mxu0 0.0
    %248 = vmatpush1.msra.mxu0 0.0
    %249 = vmatprep.subr.mxu0 0.0
    %250 = vmatpush1.msra.mxu0 0.0
    %251 = vmatprep.subr.mxu0 0.0
    %252 = vmatpush1.msra.mxu0 0.0
    %253 = vmatprep.subr.mxu0 0.0
    %254 = vmatpush1.msra.mxu0 0.0
    %255 = vmatprep.subr.mxu0 0.0
    %256 = vmatpush1.msra.mxu0 0.0
    %257 = vmatprep.subr.mxu0 0.0
    %258 = vmatpush1.msra.mxu0 0.0
    %259 = vmatprep.subr.mxu0 0.0
    %260 = vmatpush1.msra.mxu0 0.0
    %261 = vmatprep.subr.mxu0 0.0
    %262 = vmatpush1.msra.mxu0 0.0
    %263 = vmatprep.subr.mxu0 0.0
    %264 = vmatpush1.msra.mxu0 0.0
    %265 = vmatprep.subr.mxu0 0.0
    %266 = vmatpush1.msra.mxu0 0.0
    %267 = vmatprep.subr.mxu0 0.0
    %268 = vmatpush1.msra.mxu0 0.0
    %269 = vmatprep.subr.mxu0 0.0
    %270 = vmatpush1.msra.mxu0 0.0
    %271 = vmatprep.subr.mxu0 0.0
    %272 = vmatpush1.msra.mxu0 0.0
    %273 = vmatprep.subr.mxu0 0.0
    %274 = vmatpush1.msra.mxu0 0.0
    %275 = vmatprep.subr.mxu0 0.0
    %276 = vmatpush1.msra.mxu0 0.0
    %277 = vmatprep.mubr.f32.mxu0 0.0
    %278 = vmatmul.mubr.f32.gmra.mrb[0].mxu0 %v205
    %v279 = vpop.f32.mrb[0].mxu0
    %v280 = vadd.f32 %v201, %v279
    %v281 = vpop.f32.mrb[0].mxu0
    %282 = vmatprep.mubr.f32.mxu0 0.0
    %283 = vmatmul.mubr.f32.gmra.mrb[0].mxu0 %v208
    %v284 = vpop.f32.mrb[0].mxu0
    %v285 = vadd.f32 %v201, %v284
    %v286 = vpop.f32.mrb[0].mxu0
    %287 = vmatprep.mubr.f32.mxu0 0.0
    %288 = vmatmul.mubr.f32.gmra.mrb[0].mxu0 %v211
    %v289 = vpop.f32.mrb[0].mxu0
    %v290 = vadd.f32 %v201, %v289
    %v291 = vpop.f32.mrb[0].mxu0
    %292 = vdwg.mxu0
    %v293 = vmul.f32 %v186, %v280
    %v294 = vmul.f32 %v186, %v285
    %v295 = vmul.f32 %v186, %v290
    %v296 = vld [vmem:[%s8] sm:$0xff]
    %v297 = vld [vmem:[%s8 + $0x8] sm:$0xff]
    %v298 = vld [vmem:[%s8 + $0x10] sm:$0xff]
    %v299 = vld [vmem:[%s8 + $0x18] sm:$0xff]
    %v301 = vsel %vm203, %v293, 0
    %v304 = vsel %vm203, %v294, 0
    %v307 = vsel %vm203, %v295, 0
    %309 = vmatprep.subr.mxu0 0.0
    %310 = vmatpush1.msra.mxu0 %v296
    %311 = vmatprep.subr.mxu0 0.0
    %312 = vmatpush1.msra.mxu0 %v297
    %313 = vmatprep.subr.mxu0 0.0
    %314 = vmatpush1.msra.mxu0 %v298
    %315 = vmatprep.subr.mxu0 0.0
    %316 = vmatpush1.msra.mxu0 %v299
    %317 = vmatprep.subr.mxu0 0.0
    %318 = vmatpush1.msra.mxu0 0.0
    %319 = vmatprep.subr.mxu0 0.0
    %320 = vmatpush1.msra.mxu0 0.0
    %321 = vmatprep.subr.mxu0 0.0
    %322 = vmatpush1.msra.mxu0 0.0
    %323 = vmatprep.subr.mxu0 0.0
    %324 = vmatpush1.msra.mxu0 0.0
    %325 = vmatprep.subr.mxu0 0.0
    %326 = vmatpush1.msra.mxu0 0.0
    %327 = vmatprep.subr.mxu0 0.0
    %328 = vmatpush1.msra.mxu0 0.0
    %329 = vmatprep.subr.mxu0 0.0
    %330 = vmatpush1.msra.mxu0 0.0
    %331 = vmatprep.subr.mxu0 0.0
    %332 = vmatpush1.msra.mxu0 0.0
    %333 = vmatprep.subr.mxu0 0.0
    %334 = vmatpush1.msra.mxu0 0.0
    %335 = vmatprep.subr.mxu0 0.0
    %336 = vmatpush1.msra.mxu0 0.0
    %337 = vmatprep.subr.mxu0 0.0
    %338 = vmatpush1.msra.mxu0 0.0
    %339 = vmatprep.subr.mxu0 0.0
    %340 = vmatpush1.msra.mxu0 0.0
    %341 = vmatprep.subr.mxu0 0.0
    %342 = vmatpush1.msra.mxu0 0.0
    %343 = vmatprep.subr.mxu0 0.0
    %344 = vmatpush1.msra.mxu0 0.0
    %345 = vmatprep.subr.mxu0 0.0
    %346 = vmatpush1.msra.mxu0 0.0
    %347 = vmatprep.subr.mxu0 0.0
    %348 = vmatpush1.msra.mxu0 0.0
    %349 = vmatprep.subr.mxu0 0.0
    %350 = vmatpush1.msra.mxu0 0.0
    %351 = vmatprep.subr.mxu0 0.0
    %352 = vmatpush1.msra.mxu0 0.0
    %353 = vmatprep.subr.mxu0 0.0
    %354 = vmatpush1.msra.mxu0 0.0
    %355 = vmatprep.subr.mxu0 0.0
    %356 = vmatpush1.msra.mxu0 0.0
    %357 = vmatprep.subr.mxu0 0.0
    %358 = vmatpush1.msra.mxu0 0.0
    %359 = vmatprep.subr.mxu0 0.0
    %360 = vmatpush1.msra.mxu0 0.0
    %361 = vmatprep.subr.mxu0 0.0
    %362 = vmatpush1.msra.mxu0 0.0
    %363 = vmatprep.subr.mxu0 0.0
    %364 = vmatpush1.msra.mxu0 0.0
    %365 = vmatprep.subr.mxu0 0.0
    %366 = vmatpush1.msra.mxu0 0.0
    %367 = vmatprep.subr.mxu0 0.0
    %368 = vmatpush1.msra.mxu0 0.0
    %369 = vmatprep.subr.mxu0 0.0
    %370 = vmatpush1.msra.mxu0 0.0
    %371 = vmatprep.subr.mxu0 0.0
    %372 = vmatpush1.msra.mxu0 0.0
    %373 = vmatprep.mubr.f32.mxu0 0.0
    %374 = vmatmul.mubr.f32.gmra.mrb[0].mxu0 %v301
    %v375 = vpop.f32.mrb[0].mxu0
    %v376 = vadd.f32 0.0, %v375
    %v377 = vpop.f32.mrb[0].mxu0
    %378 = vmatprep.mubr.f32.mxu0 0.0
    %379 = vmatmul.mubr.f32.gmra.mrb[0].mxu0 %v304
    %v380 = vpop.f32.mrb[0].mxu0
    %v381 = vadd.f32 0.0, %v380
    %v382 = vpop.f32.mrb[0].mxu0
    %383 = vmatprep.mubr.f32.mxu0 0.0
    %384 = vmatmul.mubr.f32.gmra.mrb[0].mxu0 %v307
    %v385 = vpop.f32.mrb[0].mxu0
    %v386 = vadd.f32 0.0, %v385
    %v387 = vpop.f32.mrb[0].mxu0
    %388 = vdwg.mxu0
    %v389 = vmax.f32 %v376, %v381
    %v390 = vmax.f32 %v389, %v386
    %v391 = vsub.f32 %v376, %v390
    %v392 = vmul.f32 %v391, 1.442695
    %v393 = vpow.pop %v392
    %v394 = vsub.f32 %v381, %v390
    %v395 = vmul.f32 %v394, 1.442695
    %v396 = vpow.pop %v395
    %v397 = vsub.f32 %v386, %v390
    %v398 = vmul.f32 %v397, 1.442695
    %v399 = vpow.pop %v398
    %v400 = vadd.f32 %v393, %v396
    %v401 = vadd.f32 %v400, %v399
    %v402 = vrcp.pop %v401
    %v403 = vmul.f32 1.0, %v402
    %v404 = vmul.f32 %v393, %v403
    %v405 = vmul.f32 %v396, %v403
    %v406 = vmul.f32 %v399, %v403
    %408 = vrot.lane.b32.xlu0 %v405, 4
    %v409 = vpop.permute.xlu0 %408
    %412 = vrot.lane.b32.xlu0 %v406, 8
    %v413 = vpop.permute.xlu0 %412
    %vm415 = vcmask 31744
    %v416 = vsel %vm415, %v404, %v409
    %vm417 = vcmask 64512
    %v418 = vsel %vm417, %v416, %v413
    %vm419 = vcmask 97280
    %420 = vst.msk [vmem:[#allocation12] sm:$0xff] %vm419, %v418
    %v421 = vld [vmem:[%s9] sm:$0xf]
    %v423 = vsel %vm415, %v404, 0
    %v425 = vsel %vm415, %v405, 0
    %v427 = vsel %vm415, %v406, 0
    %vm429 = vcmask 1043456
    %v431 = vsel %vm429, %v421, 0
    %433 = vmatprep.subr.mxu0 0.0
    %434 = vmatpush1.msra.mxu0 %v431
    %435 = vmatprep.subr.mxu0 0.0
    %436 = vmatpush1.msra.mxu0 0.0
    %437 = vmatprep.subr.mxu0 0.0
    %438 = vmatpush1.msra.mxu0 0.0
    %439 = vmatprep.subr.mxu0 0.0
    %440 = vmatpush1.msra.mxu0 0.0
    %441 = vmatprep.subr.mxu0 0.0
    %442 = vmatpush1.msra.mxu0 0.0
    %443 = vmatprep.subr.mxu0 0.0
    %444 = vmatpush1.msra.mxu0 0.0
    %445 = vmatprep.subr.mxu0 0.0
    %446 = vmatpush1.msra.mxu0 0.0
    %447 = vmatprep.subr.mxu0 0.0
    %448 = vmatpush1.msra.mxu0 0.0
    %449 = vmatprep.subr.mxu0 0.0
    %450 = vmatpush1.msra.mxu0 0.0
    %451 = vmatprep.subr.mxu0 0.0
    %452 = vmatpush1.msra.mxu0 0.0
    %453 = vmatprep.subr.mxu0 0.0
    %454 = vmatpush1.msra.mxu0 0.0
    %455 = vmatprep.subr.mxu0 0.0
    %456 = vmatpush1.msra.mxu0 0.0
    %457 = vmatprep.subr.mxu0 0.0
    %458 = vmatpush1.msra.mxu0 0.0
    %459 = vmatprep.subr.mxu0 0.0
    %460 = vmatpush1.msra.mxu0 0.0
    %461 = vmatprep.subr.mxu0 0.0
    %462 = vmatpush1.msra.mxu0 0.0
    %463 = vmatprep.subr.mxu0 0.0
    %464 = vmatpush1.msra.mxu0 0.0
    %465 = vmatprep.subr.mxu0 0.0
    %466 = vmatpush1.msra.mxu0 0.0
    %467 = vmatprep.subr.mxu0 0.0
    %468 = vmatpush1.msra.mxu0 0.0
    %469 = vmatprep.subr.mxu0 0.0
    %470 = vmatpush1.msra.mxu0 0.0
    %471 = vmatprep.subr.mxu0 0.0
    %472 = vmatpush1.msra.mxu0 0.0
    %473 = vmatprep.subr.mxu0 0.0
    %474 = vmatpush1.msra.mxu0 0.0
    %475 = vmatprep.subr.mxu0 0.0
    %476 = vmatpush1.msra.mxu0 0.0
    %477 = vmatprep.subr.mxu0 0.0
    %478 = vmatpush1.msra.mxu0 0.0
    %479 = vmatprep.subr.mxu0 0.0
    %480 = vmatpush1.msra.mxu0 0.0
    %481 = vmatprep.subr.mxu0 0.0
    %482 = vmatpush1.msra.mxu0 0.0
    %483 = vmatprep.subr.mxu0 0.0
    %484 = vmatpush1.msra.mxu0 0.0
    %485 = vmatprep.subr.mxu0 0.0
    %486 = vmatpush1.msra.mxu0 0.0
    %487 = vmatprep.subr.mxu0 0.0
    %488 = vmatpush1.msra.mxu0 0.0
    %489 = vmatprep.subr.mxu0 0.0
    %490 = vmatpush1.msra.mxu0 0.0
    %491 = vmatprep.subr.mxu0 0.0
    %492 = vmatpush1.msra.mxu0 0.0
    %493 = vmatprep.subr.mxu0 0.0
    %494 = vmatpush1.msra.mxu0 0.0
    %495 = vmatprep.subr.mxu0 0.0
    %496 = vmatpush1.msra.mxu0 0.0
    %497 = vmatprep.mubr.f32.mxu0 0.0
    %498 = vmatmul.mubr.f32.gmra.mrb[0].mxu0 %v423
    %v499 = vpop.f32.mrb[0].mxu0
    %v500 = vadd.f32 0.0, %v499
    %v501 = vpop.f32.mrb[0].mxu0
    %502 = vmatprep.mubr.f32.mxu0 0.0
    %503 = vmatmul.mubr.f32.gmra.mrb[0].mxu0 %v425
    %v504 = vpop.f32.mrb[0].mxu0
    %v505 = vadd.f32 0.0, %v504
    %v506 = vpop.f32.mrb[0].mxu0
    %507 = vmatprep.mubr.f32.mxu0 0.0
    %508 = vmatmul.mubr.f32.gmra.mrb[0].mxu0 %v427
    %v509 = vpop.f32.mrb[0].mxu0
    %v510 = vadd.f32 0.0, %v509
    %v511 = vpop.f32.mrb[0].mxu0
    %512 = vdwg.mxu0
    %516 = vrot.lane.b32.xlu0 %v280, 96
    %v517 = vpop.permute.xlu0 %516
    %518 = vrot.lane.b32.xlu0 %v285, 96
    %v519 = vpop.permute.xlu0 %518
    %520 = vrot.lane.b32.xlu0 %v290, 96
    %v521 = vpop.permute.xlu0 %520
    %v525 = vmul.f32 %v500, %v517
    %v526 = vmul.f32 %v505, %v519
    %v527 = vmul.f32 %v510, %v521
    %v528 = vadd.f32 %v525, %v526
    %v529 = vadd.f32 %v528, %v527
    %v530 = vld [vmem:[%s10] sm:$0xff]
    %v531 = vld [vmem:[%s10 + $0x8] sm:$0xff]
    %v532 = vld [vmem:[%s10 + $0x10] sm:$0xff]
    %v533 = vld [vmem:[%s10 + $0x18] sm:$0xff]
    %v534 = vld [vmem:[%s11] sm:$0x1]
    %v536 = vlaneseq
    %v537 = vshrl.u32 %v536, 7
    %v538 = vsub.s32 0, %v537
    %v539 = vrot.slane %v534, %v538
    %v542 = vsel %vm203, %v529, 0
    %544 = vmatprep.subr.mxu0 0.0
    %545 = vmatpush1.msra.mxu0 %v530
    %546 = vmatprep.subr.mxu0 0.0
    %547 = vmatpush1.msra.mxu0 %v531
    %548 = vmatprep.subr.mxu0 0.0
    %549 = vmatpush1.msra.mxu0 %v532
    %550 = vmatprep.subr.mxu0 0.0
    %551 = vmatpush1.msra.mxu0 %v533
    %552 = vmatprep.subr.mxu0 0.0
    %553 = vmatpush1.msra.mxu0 0.0
    %554 = vmatprep.subr.mxu0 0.0
    %555 = vmatpush1.msra.mxu0 0.0
    %556 = vmatprep.subr.mxu0 0.0
    %557 = vmatpush1.msra.mxu0 0.0
    %558 = vmatprep.subr.mxu0 0.0
    %559 = vmatpush1.msra.mxu0 0.0
    %560 = vmatprep.subr.mxu0 0.0
    %561 = vmatpush1.msra.mxu0 0.0
    %562 = vmatprep.subr.mxu0 0.0
    %563 = vmatpush1.msra.mxu0 0.0
    %564 = vmatprep.subr.mxu0 0.0
    %565 = vmatpush1.msra.mxu0 0.0
    %566 = vmatprep.subr.mxu0 0.0
    %567 = vmatpush1.msra.mxu0 0.0
    %568 = vmatprep.subr.mxu0 0.0
    %569 = vmatpush1.msra.mxu0 0.0
    %570 = vmatprep.subr.mxu0 0.0
    %571 = vmatpush1.msra.mxu0 0.0
    %572 = vmatprep.subr.mxu0 0.0
    %573 = vmatpush1.msra.mxu0 0.0
    %574 = vmatprep.subr.mxu0 0.0
    %575 = vmatpush1.msra.mxu0 0.0
    %576 = vmatprep.subr.mxu0 0.0
    %577 = vmatpush1.msra.mxu0 0.0
    %578 = vmatprep.subr.mxu0 0.0
    %579 = vmatpush1.msra.mxu0 0.0
    %580 = vmatprep.subr.mxu0 0.0
    %581 = vmatpush1.msra.mxu0 0.0
    %582 = vmatprep.subr.mxu0 0.0
    %583 = vmatpush1.msra.mxu0 0.0
    %584 = vmatprep.subr.mxu0 0.0
    %585 = vmatpush1.msra.mxu0 0.0
    %586 = vmatprep.subr.mxu0 0.0
    %587 = vmatpush1.msra.mxu0 0.0
    %588 = vmatprep.subr.mxu0 0.0
    %589 = vmatpush1.msra.mxu0 0.0
    %590 = vmatprep.subr.mxu0 0.0
    %591 = vmatpush1.msra.mxu0 0.0
    %592 = vmatprep.subr.mxu0 0.0
    %593 = vmatpush1.msra.mxu0 0.0
    %594 = vmatprep.subr.mxu0 0.0
    %595 = vmatpush1.msra.mxu0 0.0
    %596 = vmatprep.subr.mxu0 0.0
    %597 = vmatpush1.msra.mxu0 0.0
    %598 = vmatprep.subr.mxu0 0.0
    %599 = vmatpush1.msra.mxu0 0.0
    %600 = vmatprep.subr.mxu0 0.0
    %601 = vmatpush1.msra.mxu0 0.0
    %602 = vmatprep.subr.mxu0 0.0
    %603 = vmatpush1.msra.mxu0 0.0
    %604 = vmatprep.subr.mxu0 0.0
    %605 = vmatpush1.msra.mxu0 0.0
    %606 = vmatprep.subr.mxu0 0.0
    %607 = vmatpush1.msra.mxu0 0.0
    %608 = vmatprep.mubr.f32.mxu0 0.0
    %609 = vmatmul.mubr.f32.gmra.mrb[0].mxu0 %v542
    %v610 = vpop.f32.mrb[0].mxu0
    %v611 = vadd.f32 %v539, %v610
    %v612 = vpop.f32.mrb[0].mxu0
    %613 = vdwg.mxu0
    %614 = vst.msk [vmem:[#allocation11] sm:$0xff] %vm203, %v611
    // Predicated region
    $region70: #{tpu_custom_call.1} parent=1 // pred_check
      _
    $region71: #{tpu_custom_call.1} parent=1 // pred_check_branch
      %616 = sbr.rel (0) target = $region73
    $region72: #{tpu_custom_call.1} parent=1 // pred_region
      %s618 = ssub.s32 128, 128
      %619 = vsyncadd [#allocation4], %s618
      %s621 = sshll.u32 [#allocation11], 4
      %s622 = int_to_ptr.vmem [resolvable:$true] %s621
      %624 = dma.vmem_to_hbm [thread:$0]  %s622, 128, %s12, [#allocation4]
    $region73: #{tpu_custom_call.1} parent=1 // pred_fallthru
      _
    // Predicated region
    $region74: #{tpu_custom_call.1} parent=1 // pred_check
      _
    $region75: #{tpu_custom_call.1} parent=1 // pred_check_branch
      %626 = sbr.rel (0) target = $region77
    $region76: #{tpu_custom_call.1} parent=1 // pred_region
      %s628 = ssub.s32 128, 128
      %629 = vsyncadd [#allocation13], %s628
      %s631 = sshll.u32 [#allocation12], 4
      %s632 = int_to_ptr.vmem [resolvable:$true] %s631
      %634 = dma.vmem_to_hbm [thread:$0]  %s632, 128, %s13, [#allocation13]
    $region77: #{tpu_custom_call.1} parent=1 // pred_fallthru
      _
    // Predicated region
    $region78: #{tpu_custom_call.1} parent=1 // pred_check
      _
    $region79: #{tpu_custom_call.1} parent=1 // pred_check_branch
      %636 = sbr.rel (0) target = $region81
    $region80: #{tpu_custom_call.1} parent=1 // pred_region
      %637 = dma.done [#allocation4], 128
    $region81: #{tpu_custom_call.1} parent=1 // pred_fallthru
      _
    // Predicated region
    $region82: #{tpu_custom_call.1} parent=1 // pred_check
      _
    $region83: #{tpu_custom_call.1} parent=1 // pred_check_branch
      %639 = sbr.rel (0) target = $region85
    $region84: #{tpu_custom_call.1} parent=1 // pred_region
      %640 = dma.done [#allocation13], 128
    $region85: #{tpu_custom_call.1} parent=1 // pred_fallthru
      _
    %641 = vsyncpa [#allocation3], 1
    %642 = vsyncpa [#allocation6], 1
    %643 = vsyncpa [#allocation9], 1
    %644 = vsyncpa [#allocation4], 1
    %645 = vsyncpa [#allocation13], 1

</llo_original>
